<compile_context>
chip_gen: v6e
topology: v6e:2x2x1
jax: 0.10.0
libtpu: 0.0.40
codegen_flags: <defaults>
</compile_context>

<pallas_src>
import math
import functools

import jax
import jax.numpy as jnp
from jax.experimental import pallas as pl
from jax.experimental.pallas import tpu as pltpu


# ---------------------------------------------------------------------------
# PE table (same construction as the module's buffer).
# ---------------------------------------------------------------------------
def make_positional_encoding_table(d_model: int, seq_len: int) -> jnp.ndarray:
    position = jnp.arange(seq_len, dtype=jnp.float32)[:, None]            # (S, 1)
    div_term = jnp.exp(
        jnp.arange(0, d_model, 2, dtype=jnp.float32) * (-math.log(10000.0) / d_model)
    )                                                                      # (D/2,)
    angles = position * div_term[None, :]                                  # (S, D/2)
    pe = jnp.zeros((seq_len, d_model), dtype=jnp.float32)
    pe = pe.at[:, 0::2].set(jnp.sin(angles))
    pe = pe.at[:, 1::2].set(jnp.cos(angles))
    return pe


# ---------------------------------------------------------------------------
# Stateless per-element hash (murmur3-style finalizer).  uint32 arithmetic
# wraps, which is exactly what we want for mixing.
# ---------------------------------------------------------------------------
def _hash_u32(idx_u32, seed_u32):
    h = idx_u32 * jnp.uint32(0x9E3779B1) + seed_u32
    h = h ^ (h >> 16)
    h = h * jnp.uint32(0x85EBCA6B)
    h = h ^ (h >> 13)
    h = h * jnp.uint32(0xC2B2AE35)
    h = h ^ (h >> 16)
    return h


# ---------------------------------------------------------------------------
# Kernel: one (B, TN) lane-dense tile of the flattened (B, S*D) activations.
# ---------------------------------------------------------------------------
def _pe_dropout_kernel(seed_ref, x_ref, pe_ref, o_ref, *,
                       p, apply_dropout, n_flat, tile_n):
    # pe_ref is (1, TN); broadcast-add over the batch (sublane) axis.
    y = x_ref[...] + pe_ref[...]

    if apply_dropout and p > 0.0:
        b, tn = x_ref.shape
        row = jax.lax.broadcasted_iota(jnp.uint32, (b, tn), 0)      # batch index
        col = jax.lax.broadcasted_iota(jnp.uint32, (b, tn), 1)      # in-tile offset
        start = (pl.program_id(0) * tile_n).astype(jnp.uint32)
        # Global flat element index -> unique dropout stream per element,
        # independent of tiling, so all grid axes are safely "parallel".
        idx = row * jnp.uint32(n_flat) + start + col
        h = _hash_u32(idx, seed_ref[0].astype(jnp.uint32))
        # keep with probability (1 - p): drop if hash < round(p * 2^32).
        # (Truncation/clamp error is <= 2^-32 in the drop probability.)
        thr = jnp.uint32(min(int(round(p * 4294967296.0)), 4294967295))
        keep = h >= thr
        scale = jnp.asarray(1.0 / (1.0 - p), dtype=y.dtype)
        y = jnp.where(keep, y * scale, jnp.zeros_like(y))

    o_ref[...] = y


# ---------------------------------------------------------------------------
# Tile-size picker: largest multiple of 128 that divides N and keeps the
# (B, TN) block at roughly <= 1 MiB (safe for v5e/v6e/v7x scoped VMEM with
# double-buffered in + out blocks).
# ---------------------------------------------------------------------------
def _choose_tile_n(n, b, itemsize, target_bytes=1 << 20):
    if n % 128 != 0:
        return n  # odd shapes: one full (lane-masked) block; still correct.
    cap = max(128, (target_bytes // max(b * itemsize, 1)) // 128 * 128)
    k = min(cap, n) // 128
    while k >= 1:
        tn = k * 128
        if n % tn == 0:
            return tn
        k -= 1
    return 128


# ---------------------------------------------------------------------------
# Wrapper.
# ---------------------------------------------------------------------------
def positional_encoding_forward(x, pe_table, *, dropout_p: float,
                                training: bool, seed: int = 0,
                                force_pallas: bool = False):
    """x: (B, S, D).  Adds pe_table[:S] and applies dropout when training."""
    B, S, D = x.shape
    pe = pe_table[:S, :].astype(x.dtype)          # matches self.pe[:, :x.shape[1], :]
    apply_dropout = bool(training) and float(dropout_p) > 0.0

    if not apply_dropout and not force_pallas:
        # Eval / p == 0: pure broadcast add; let XLA fuse it (perf feedback).
        return x + pe[None, :, :]

    # Lane-dense flattening: last dim becomes S*D (multiple of 128 for typical
    # transformer shapes), avoiding masked partial stores when D is small.
    N = S * D
    x2 = x.reshape(B, N)
    pe2 = pe.reshape(1, N)

    TN = _choose_tile_n(N, B, jnp.dtype(x.dtype).itemsize)
    grid = (N // TN,)

    kernel = functools.partial(
        _pe_dropout_kernel,
        p=float(dropout_p),
        apply_dropout=apply_dropout,
        n_flat=N,
        tile_n=TN,
    )

    grid_spec = pltpu.PrefetchScalarGridSpec(
        num_scalar_prefetch=1,
        grid=grid,
        in_specs=[
            pl.BlockSpec((B, TN), lambda t, seed_ref: (0, t)),   # x  (B rows = full batch)
            pl.BlockSpec((1, TN), lambda t, seed_ref: (0, t)),   # pe (broadcast over batch)
        ],
        out_specs=pl.BlockSpec((B, TN), lambda t, seed_ref: (0, t)),
    )

    seed_arr = jnp.array([seed], dtype=jnp.int32)

    out2 = pl.pallas_call(
        kernel,
        out_shape=jax.ShapeDtypeStruct((B, N), x.dtype),
        grid_spec=grid_spec,
        compiler_params=pltpu.CompilerParams(
            # Stateless per-element hash => blocks are order-independent;
            # "parallel" lets both TensorCores run on v7x.
            dimension_semantics=("parallel",),
        ),
    )(seed_arr, x2, pe2)

    return out2.reshape(B, S, D)


# ---------------------------------------------------------------------------
# Self-test.
# ---------------------------------------------------------------------------
if __name__ == "__main__":
    d_model = 32
    seq_len = 8
    batch = 2
    dropout_p = 0.1

    key = jax.random.PRNGKey(0)
    x = jax.random.normal(key, (batch, seq_len, d_model), dtype=jnp.float32)

    pe_table = make_positional_encoding_table(d_model, seq_len)
    ref = x + pe_table[None, :seq_len, :]

    # 1) Eval mode through the Pallas kernel (deterministic exact check).
    out_eval = positional_encoding_forward(
        x, pe_table, dropout_p=dropout_p, training=False, force_pallas=True
    )
    jax.block_until_ready(out_eval)
    assert out_eval.shape == x.shape
    assert jnp.allclose(out_eval, ref, atol=1e-6), "eval-mode mismatch"

    # 2) Eval fast path (no Pallas) should agree too.
    out_eval_xla = positional_encoding_forward(
        x, pe_table, dropout_p=dropout_p, training=False
    )
    assert jnp.allclose(out_eval_xla, ref, atol=1e-6), "eval fast-path mismatch"

    # 3) Training mode: in-kernel dropout (inverted scaling).
    out_train = positional_encoding_forward(
        x, pe_table, dropout_p=dropout_p, training=True, seed=123
    )
    jax.block_until_ready(out_train)
    assert out_train.shape == x.shape
    kept = out_train != 0.0
    scale = 1.0 / (1.0 - dropout_p)
    # Kept elements must equal (x + pe) * scale exactly where not dropped.
    assert jnp.allclose(
        jnp.where(kept, out_train, 0.0),
        jnp.where(kept, ref * scale, 0.0),
        atol=1e-5,
    ), "training-mode kept-element mismatch"
    drop_rate = 1.0 - jnp.mean(kept.astype(jnp.float32))
    assert drop_rate < 0.5, f"implausible drop rate {drop_rate}"

    print("KERNEL_OK")
</pallas_src>

<mosaic_0001>
module attributes {stable_mosaic.version = 11 : i64} {
  func.func @_pe_dropout_kernel(%arg0: i32, %arg1: memref<1xi32, #tpu.memory_space<smem>>, %arg2: memref<2x256xf32, #tpu.memory_space<vmem>>, %arg3: memref<1x256xf32, #tpu.memory_space<vmem>>, %arg4: memref<2x256xf32, #tpu.memory_space<vmem>>) attributes {dimension_semantics = [#tpu.dimension_semantics<parallel>], iteration_bounds = array<i64: 1>, scalar_prefetch = 1 : i64, scratch_operands = 0 : i64, tpu.core_type = #tpu.core_type<tc>, window_params = [{transform_indices = @transform_0, window_bounds = array<i64: 2, 256>}, {transform_indices = @transform_1, window_bounds = array<i64: 1, 256>}, {transform_indices = @transform_2, window_bounds = array<i64: 2, 256>}]} {
    %c0 = arith.constant 0 : index
    %c0_0 = arith.constant 0 : index
    %0 = vector.load %arg2[%c0, %c0_0] : memref<2x256xf32, #tpu.memory_space<vmem>>, vector<2x256xf32>
    %c0_1 = arith.constant 0 : index
    %c0_2 = arith.constant 0 : index
    %1 = vector.load %arg3[%c0_1, %c0_2] : memref<1x256xf32, #tpu.memory_space<vmem>>, vector<1x256xf32>
    %2 = vector.broadcast %1 : vector<1x256xf32> to vector<2x256xf32>
    %3 = arith.addf %0, %2 : vector<2x256xf32>
    %c0_3 = arith.constant 0 : index
    %c0_4 = arith.constant 0 : index
    %4 = vector.load %arg4[%c0_3, %c0_4] : memref<2x256xf32, #tpu.memory_space<vmem>>, vector<2x256xf32>
    tpu.vector_store %arg4[%c0_3, %c0_4], %3 {strides = array<i32>} : memref<2x256xf32, #tpu.memory_space<vmem>>, vector<2x256xf32>,
    return
  }
  func.func @transform_0(%arg0: i32, %arg1: memref<1xi32, #tpu.memory_space<smem>>) -> (i32, i32) {
    %c0_i32 = arith.constant 0 : i32
    %c0_i32_0 = arith.constant 0 : i32
    return %c0_i32, %arg0 : i32, i32
  }
  func.func @transform_1(%arg0: i32, %arg1: memref<1xi32, #tpu.memory_space<smem>>) -> (i32, i32) {
    %c0_i32 = arith.constant 0 : i32
    %c0_i32_0 = arith.constant 0 : i32
    return %c0_i32, %arg0 : i32, i32
  }
  func.func @transform_2(%arg0: i32, %arg1: memref<1xi32, #tpu.memory_space<smem>>) -> (i32, i32) {
    %c0_i32 = arith.constant 0 : i32
    %c0_i32_0 = arith.constant 0 : i32
    return %c0_i32, %arg0 : i32, i32
  }
}

</mosaic_0001>

<llo_original>
// kernel: tpu_custom_call.1
$region0: #{tpu_custom_call.1}
  #allocation0 [shape = 'u32[]', space=smem, size = 0x4, offset = 0x4, fixed_abs, tag = 'smem constant byte address 0x4 - core index']
  #allocation1 [shape = 'u32[144,128]{1,0:T(1,128)}', space=vmem, size = 0x12000, scoped, tag = 'internal scratch']
  #allocation2 [shape = 's32[1]{0}', space=sflag, size = 0x4, scoped, tag = 'scoped memory for tpu_custom_call.1']
  #allocation3 [shape = 's32[1]{0:T(128)S(6)}', space=smem, size = 0x200, scoped, tag = 'prefetched SMEM operand 0']
  %s0 = inlined_call_operand.<no memory space> [shape: s32[1], index: 0, kind: input, shape index: {}]
  %s1 = inlined_call_operand.hbm [shape: f32[2,256], index: 1, kind: input, shape index: {}]
  %s2 = inlined_call_operand.vmem [shape: f32[1,256], index: 2, kind: input, shape index: {}]
  %s3 = inlined_call_operand.hbm [shape: f32[2,256], index: 3, kind: output, shape index: {}]
  %s4 = sld [smem:[#allocation0]]
  $region22: #{tpu_custom_call.1} parent=0
    _
  %s6 = ssub.s32 1, %s4
  %s7 = scalar_select 0, %s6, %s4
  %8 = sst [smem:[#allocation3]] %s0
  $region1: #{tpu_custom_call.1} parent=0
    #allocation4 [shape = 'u8[2048]{0}', space=vmem, size = 0x800, scoped, tag = 'input window, operand 1, single buffered']
    #allocation5 [shape = 's32[1]{0}', space=sflag, size = 0x4, scoped, tag = 'scoped memory for tpu_custom_call.1']
    #allocation6 [shape = 's32[1]{0}', space=sflag, size = 0x4, scoped, tag = 'scoped memory for tpu_custom_call.1']
    #allocation7 [shape = 'u8[2048]{0}', space=vmem, size = 0x800, scoped, tag = 'output window, operand 0, single buffered']
    %9 = vsyncpa [#allocation5], 0
    %10 = vsyncpa [#allocation6], 0
    // Predicated region
    $region2: #{tpu_custom_call.1} parent=1 // pred_check
      _
    $region3: #{tpu_custom_call.1} parent=1 // pred_check_branch
      %12 = sbr.rel (0) target = $region5
    $region4: #{tpu_custom_call.1} parent=1 // pred_region
      %s14 = ssub.s32 64, 64
      %15 = vsyncadd [#allocation5], %s14
      %s17 = sshll.u32 [#allocation4], 4
      %s18 = int_to_ptr.vmem [resolvable:$true] %s17
      %20 = dma.hbm_to_vmem [thread:$0]  %s1, 64, %s18, [#allocation5]
    $region5: #{tpu_custom_call.1} parent=1 // pred_fallthru
      _
    // Predicated region
    $region6: #{tpu_custom_call.1} parent=1 // pred_check
      _
    $region7: #{tpu_custom_call.1} parent=1 // pred_check_branch
      %22 = sbr.rel (0) target = $region9
    $region8: #{tpu_custom_call.1} parent=1 // pred_region
      _
    $region9: #{tpu_custom_call.1} parent=1 // pred_fallthru
      _
    // Predicated region
    $region10: #{tpu_custom_call.1} parent=1 // pred_check
      _
    $region11: #{tpu_custom_call.1} parent=1 // pred_check_branch
      %24 = sbr.rel (0) target = $region13
    $region12: #{tpu_custom_call.1} parent=1 // pred_region
      %25 = dma.done [#allocation5], 64
    $region13: #{tpu_custom_call.1} parent=1 // pred_fallthru
      _
    %v26 = vld [vmem:[#allocation4] sm:$0xf]
    %v27 = vld [vmem:[%s2] sm:$0x3]
    %v29 = vlaneseq
    %v30 = vshrl.u32 %v29, 7
    %v31 = vsub.s32 0, %v30
    %v32 = vrot.slane %v27, %v31
    %v33 = vlaneseq
    %v34 = vshrl.u32 %v33, 7
    %v35 = vsub.s32 1, %v34
    %v36 = vrot.slane %v27, %v35
    %v37 = vcombine.low %v32, %v36
    %v39 = vunpack.c.l.s4 1983009808
    %v40 = vunpack.c.0.s8 %v39
    %v41 = vlaneseq
    %v42 = vshrl.u32 %v41, 7
    %v43 = vsub.s32 %v40, %v42
    %v44 = vrot.slane %v37, %v43
    %v46 = vadd.f32 %v26, %v44
    %47 = vst [vmem:[#allocation7] sm:$0xf] %v46
    // Predicated region
    $region14: #{tpu_custom_call.1} parent=1 // pred_check
      _
    $region15: #{tpu_custom_call.1} parent=1 // pred_check_branch
      %49 = sbr.rel (0) target = $region17
    $region16: #{tpu_custom_call.1} parent=1 // pred_region
      %s51 = ssub.s32 64, 64
      %52 = vsyncadd [#allocation6], %s51
      %s54 = sshll.u32 [#allocation7], 4
      %s55 = int_to_ptr.vmem [resolvable:$true] %s54
      %57 = dma.vmem_to_hbm [thread:$0]  %s55, 64, %s3, [#allocation6]
    $region17: #{tpu_custom_call.1} parent=1 // pred_fallthru
      _
    // Predicated region
    $region18: #{tpu_custom_call.1} parent=1 // pred_check
      _
    $region19: #{tpu_custom_call.1} parent=1 // pred_check_branch
      %59 = sbr.rel (0) target = $region21
    $region20: #{tpu_custom_call.1} parent=1 // pred_region
      %60 = dma.done [#allocation6], 64
    $region21: #{tpu_custom_call.1} parent=1 // pred_fallthru
      _
    %61 = vsyncpa [#allocation5], 1
    %62 = vsyncpa [#allocation6], 1

</llo_original>
